<compile_context>
chip_gen: v7x
topology: tpu7x:2x2x1
jax: 0.10.0
libtpu: 0.0.40
codegen_flags: <defaults>
</compile_context>

<pallas_src>
import jax
import jax.numpy as jnp
from jax.experimental import pallas as pl
from jax.experimental.pallas import tpu as pltpu

LANE = 128  # f32 lane width


def energy_kernel(x_ref, w1_ref, b1_ref, w2_ref, b2_ref, out_ref):
    """One grid step: GB graphs at once.

    x_ref  : (GB*N, Dp)  node features of the GB graphs of this step (flat rows)
    w1_ref : (Dp, Hp)    hidden projection (resident across the grid)
    b1_ref : (1, Hp)
    w2_ref : (Hp, 1)     per-node energy head as a column vector
    b2_ref : (1, 1)
    out_ref: (GB, 1)     per-step output block
    """
    gb = out_ref.shape[0]
    m = x_ref.shape[0]
    n = m // gb  # nodes per graph (static)

    # Hidden layer: one big MXU matmul over all GB*N rows, f32 accumulation.
    h = jnp.dot(x_ref[...], w1_ref[...], preferred_element_type=jnp.float32)
    h = jnp.maximum(h + b1_ref[...], 0.0)  # (GB*N, Hp), f32 (VPU)

    # Reordered readout: sum over nodes first (sublane reduce), then a single
    # H-reduction per graph via an MXU dot with w2.
    s = h.reshape(gb, n, h.shape[-1]).sum(axis=1)  # (GB, Hp)
    e = jnp.dot(s, w2_ref[...], preferred_element_type=jnp.float32)  # (GB, 1)

    # Each node contributes b2 once -> scale by N.
    out_ref[...] = e + jnp.float32(n) * b2_ref[...]


def pn_forward(x, w1, b1, w2, b2, *, compute_dtype=jnp.float32,
               row_tile_target=256, vmem_limit_bytes=32 * 1024 * 1024):
    """PN.forward: returns energy with shape [B, 1] (the unsqueeze(1))."""
    B, N, D = x.shape
    H = w1.shape[1]

    # Pad feature / hidden dims to full lane multiples (zeros contribute 0).
    Dp = max(LANE, ((D + LANE - 1) // LANE) * LANE)
    Hp = max(LANE, ((H + LANE - 1) // LANE) * LANE)

    xc = x.astype(compute_dtype)
    w1c = w1.astype(compute_dtype)

    xp = jnp.pad(xc, ((0, 0), (0, 0), (0, Dp - D))) if Dp != D else xc
    w1p = jnp.pad(w1c, ((0, Dp - D), (0, Hp - H)))
    b1p = jnp.pad(b1.astype(jnp.float32), ((0, 0), (0, Hp - H)))
    w2col = jnp.pad(w2.astype(jnp.float32), ((0, 0), (0, Hp - H))).reshape(Hp, 1)
    b2f = b2.astype(jnp.float32)

    # Graphs per grid step: make the matmul M-dim approach row_tile_target.
    GB = min(B, max(1, (row_tile_target + N - 1) // N))
    if GB < B:
        # Multi-step grid: sublane-align the per-step output block.
        GB = min(((GB + 7) // 8) * 8, B)
    Bp = ((B + GB - 1) // GB) * GB
    if Bp != B:
        xp = jnp.pad(xp, ((0, Bp - B), (0, 0), (0, 0)))

    x_flat = xp.reshape(Bp * N, Dp)  # graph-major rows
    M_tile = GB * N
    grid = (Bp // GB,)

    itemsize = jnp.dtype(compute_dtype).itemsize
    flops = 2 * Bp * N * Dp * Hp + 2 * Bp * Hp
    bytes_accessed = (Bp * N * Dp * itemsize + Dp * Hp * itemsize
                      + Hp * 4 + Hp * 4 + 4 + Bp * 4)

    out = pl.pallas_call(
        energy_kernel,
        out_shape=jax.ShapeDtypeStruct((Bp, 1), jnp.float32),
        grid=grid,
        in_specs=[
            pl.BlockSpec((M_tile, Dp), lambda i: (i, 0)),  # per-step node rows
            pl.BlockSpec((Dp, Hp), lambda i: (0, 0)),       # W1 (resident)
            pl.BlockSpec((1, Hp), lambda i: (0, 0)),        # b1 (resident)
            pl.BlockSpec((Hp, 1), lambda i: (0, 0)),        # w2 column (resident)
            pl.BlockSpec((1, 1), lambda i: (0, 0)),         # b2 (resident)
        ],
        out_specs=pl.BlockSpec((GB, 1), lambda i: (i, 0)),  # per-step block
        compiler_params=pltpu.CompilerParams(
            dimension_semantics=("parallel",),
            vmem_limit_bytes=vmem_limit_bytes,
        ),
        cost_estimate=pl.CostEstimate(
            flops=flops, transcendentals=0, bytes_accessed=int(bytes_accessed)),
    )(x_flat, w1p, b1p, w2col, b2f)

    return out[:B]


def pn_reference(x, w1, b1, w2, b2):
    B, N, D = x.shape
    h = jnp.maximum(jnp.einsum("bnd,dh->bnh", x, w1) + b1[0], 0.0)
    node_e = jnp.sum(h * w2[0], axis=-1) + b2[0, 0]
    energy = node_e.sum(axis=1)           # model(data)['energy']  -> [B]
    return energy[:, None]                 # .unsqueeze(1)          -> [B, 1]


if __name__ == "__main__":
    # Small shapes: B graphs, N nodes each, D input features, H hidden width.
    B, N, D, H = 2, 8, 32, 64

    key = jax.random.PRNGKey(0)
    kx, k1, k2, k3, k4 = jax.random.split(key, 5)

    x = jax.random.normal(kx, (B, N, D), dtype=jnp.float32)
    w1 = jax.random.normal(k1, (D, H), dtype=jnp.float32) * 0.1
    b1 = jax.random.normal(k2, (1, H), dtype=jnp.float32) * 0.1
    w2 = jax.random.normal(k3, (1, H), dtype=jnp.float32) * 0.1
    b2 = jax.random.normal(k4, (1, 1), dtype=jnp.float32) * 0.1

    ref = pn_reference(x, w1, b1, w2, b2)

    # f32 path (v5e-safe), strict check.
    out = pn_forward(x, w1, b1, w2, b2)
    out = jax.block_until_ready(out)
    assert out.shape == (B, 1), out.shape
    assert jnp.allclose(out, ref, atol=1e-3, rtol=1e-3), (out, ref)

    # bf16 MXU-input path (v6e/v7x optimization), loose check.
    out_bf16 = pn_forward(x, w1, b1, w2, b2, compute_dtype=jnp.bfloat16)
    out_bf16 = jax.block_until_ready(out_bf16)
    assert out_bf16.shape == (B, 1), out_bf16.shape
    assert jnp.allclose(out_bf16, ref, atol=5e-2, rtol=5e-2), (out_bf16, ref)

    print("KERNEL_OK")
</pallas_src>

<mosaic_0001>
module attributes {stable_mosaic.version = 11 : i64} {
  func.func @energy_kernel(%arg0: i32, %arg1: memref<16x128xf32, #tpu.memory_space<vmem>>, %arg2: memref<128x128xf32, #tpu.memory_space<vmem>>, %arg3: memref<1x128xf32, #tpu.memory_space<vmem>>, %arg4: memref<128x1xf32, #tpu.memory_space<vmem>>, %arg5: memref<1x1xf32, #tpu.memory_space<vmem>>, %arg6: memref<2x1xf32, #tpu.memory_space<vmem>>) attributes {dimension_semantics = [#tpu.dimension_semantics<parallel>], iteration_bounds = array<i64: 1>, scalar_prefetch = 0 : i64, scratch_operands = 0 : i64, tpu.core_type = #tpu.core_type<tc>, window_params = [{transform_indices = @transform_0, window_bounds = array<i64: 16, 128>}, {pipeline_mode = #tpu.pipeline_mode<synchronous>, transform_indices = @transform_1, window_bounds = array<i64: 128, 128>}, {pipeline_mode = #tpu.pipeline_mode<synchronous>, transform_indices = @transform_2, window_bounds = array<i64: 1, 128>}, {pipeline_mode = #tpu.pipeline_mode<synchronous>, transform_indices = @transform_3, window_bounds = array<i64: 128, 1>}, {pipeline_mode = #tpu.pipeline_mode<synchronous>, transform_indices = @transform_4, window_bounds = array<i64: 1, 1>}, {transform_indices = @transform_5, window_bounds = array<i64: 2, 1>}]} {
    %c0 = arith.constant 0 : index
    %c0_0 = arith.constant 0 : index
    %0 = vector.load %arg1[%c0, %c0_0] : memref<16x128xf32, #tpu.memory_space<vmem>>, vector<16x128xf32>
    %c0_1 = arith.constant 0 : index
    %c0_2 = arith.constant 0 : index
    %1 = vector.load %arg2[%c0_1, %c0_2] : memref<128x128xf32, #tpu.memory_space<vmem>>, vector<128x128xf32>
    %cst = arith.constant dense<0.000000e+00> : vector<16x128xf32>
    %2 = tpu.matmul %0, %1, %cst {dimension_numbers = #tpu.dot_dimension_numbers<[1], [0], [0], [1], [0, 0, 1, 1], [], []>} : vector<16x128xf32>, vector<128x128xf32>, vector<16x128xf32> -> vector<16x128xf32>
    %c0_3 = arith.constant 0 : index
    %c0_4 = arith.constant 0 : index
    %3 = vector.load %arg3[%c0_3, %c0_4] : memref<1x128xf32, #tpu.memory_space<vmem>>, vector<1x128xf32>
    %4 = vector.broadcast %3 : vector<1x128xf32> to vector<16x128xf32>
    %5 = arith.addf %2, %4 : vector<16x128xf32>
    %cst_5 = arith.constant 0.000000e+00 : f32
    %6 = vector.broadcast %cst_5 : f32 to vector<16x128xf32>
    %7 = arith.maximumf %5, %6 : vector<16x128xf32>
    %8 = vector.shape_cast %7 : vector<16x128xf32> to vector<2x8x128xf32>
    %cst_6 = arith.constant dense<0.000000e+00> : vector<2x128xf32>
    %9 = vector.multi_reduction <add>, %8, %cst_6 [1] : vector<2x8x128xf32> to vector<2x128xf32>
    %c0_7 = arith.constant 0 : index
    %c0_8 = arith.constant 0 : index
    %10 = vector.load %arg4[%c0_7, %c0_8] : memref<128x1xf32, #tpu.memory_space<vmem>>, vector<128x1xf32>
    %cst_9 = arith.constant dense<0.000000e+00> : vector<2x1xf32>
    %11 = tpu.matmul %9, %10, %cst_9 {dimension_numbers = #tpu.dot_dimension_numbers<[1], [0], [0], [1], [0, 0, 1, 1], [], []>} : vector<2x128xf32>, vector<128x1xf32>, vector<2x1xf32> -> vector<2x1xf32>
    %c0_10 = arith.constant 0 : index
    %c0_11 = arith.constant 0 : index
    %12 = vector.load %arg5[%c0_10, %c0_11] : memref<1x1xf32, #tpu.memory_space<vmem>>, vector<1x1xf32>
    %cst_12 = arith.constant 8.000000e+00 : f32
    %13 = vector.broadcast %cst_12 : f32 to vector<1x1xf32>
    %14 = arith.mulf %13, %12 : vector<1x1xf32>
    %15 = vector.broadcast %14 : vector<1x1xf32> to vector<2x1xf32>
    %16 = arith.addf %11, %15 : vector<2x1xf32>
    %c0_13 = arith.constant 0 : index
    %c0_14 = arith.constant 0 : index
    %17 = vector.load %arg6[%c0_13, %c0_14] : memref<2x1xf32, #tpu.memory_space<vmem>>, vector<2x1xf32>
    tpu.vector_store %arg6[%c0_13, %c0_14], %16 {strides = array<i32>} : memref<2x1xf32, #tpu.memory_space<vmem>>, vector<2x1xf32>,
    return
  }
  func.func @transform_0(%arg0: i32) -> (i32, i32) {
    %c0_i32 = arith.constant 0 : i32
    %c0_i32_0 = arith.constant 0 : i32
    return %arg0, %c0_i32 : i32, i32
  }
  func.func @transform_1(%arg0: i32) -> (i32, i32) {
    %c0_i32 = arith.constant 0 : i32
    %c0_i32_0 = arith.constant 0 : i32
    %c0_i32_1 = arith.constant 0 : i32
    return %c0_i32, %c0_i32_0 : i32, i32
  }
  func.func @transform_2(%arg0: i32) -> (i32, i32) {
    %c0_i32 = arith.constant 0 : i32
    %c0_i32_0 = arith.constant 0 : i32
    %c0_i32_1 = arith.constant 0 : i32
    return %c0_i32, %c0_i32_0 : i32, i32
  }
  func.func @transform_3(%arg0: i32) -> (i32, i32) {
    %c0_i32 = arith.constant 0 : i32
    %c0_i32_0 = arith.constant 0 : i32
    %c0_i32_1 = arith.constant 0 : i32
    return %c0_i32, %c0_i32_0 : i32, i32
  }
  func.func @transform_4(%arg0: i32) -> (i32, i32) {
    %c0_i32 = arith.constant 0 : i32
    %c0_i32_0 = arith.constant 0 : i32
    %c0_i32_1 = arith.constant 0 : i32
    return %c0_i32, %c0_i32_0 : i32, i32
  }
  func.func @transform_5(%arg0: i32) -> (i32, i32) {
    %c0_i32 = arith.constant 0 : i32
    %c0_i32_0 = arith.constant 0 : i32
    return %arg0, %c0_i32 : i32, i32
  }
}

</mosaic_0001>

<llo_original>
// kernel: tpu_custom_call.1
$region0: #{tpu_custom_call.1}
  #allocation0 [shape = 'u32[]', space=smem, size = 0x4, offset = 0x4, fixed_abs, tag = 'smem constant byte address 0x4 - core index']
  #allocation1 [shape = 'u32[144,128]{1,0:T(1,128)}', space=vmem, size = 0x12000, scoped, tag = 'internal scratch']
  #allocation2 [shape = 'f32[1,1]{1,0:T(1,128)S(1)}', space=vmem, size = 0x200, scoped, tag = 'scoped memory for tpu_custom_call.1']
  %s0 = inlined_call_operand.hbm [shape: f32[16,128], index: 0, kind: input, shape index: {}]
  %s1 = inlined_call_operand.vmem [shape: f32[128,128], index: 1, kind: input, shape index: {}]
  %s2 = inlined_call_operand.vmem [shape: f32[1,128], index: 2, kind: input, shape index: {}]
  %s3 = inlined_call_operand.vmem [shape: f32[128,1], index: 3, kind: input, shape index: {}]
  %s4 = inlined_call_operand.<no memory space> [shape: f32[1,1], index: 4, kind: input, shape index: {}]
  %s5 = inlined_call_operand.vmem [shape: f32[2,1], index: 5, kind: output, shape index: {}]
  %s6 = sld [smem:[#allocation0]]
  $region34: #{tpu_custom_call.1} parent=0
    _
  %s8 = ssub.s32 1, %s6
  %s9 = scalar_select 0, %s8, %s6
  %v10 = vstv %s4
  %11 = vst [vmem:[#allocation2] sm:$0x1] %v10
  $region1: #{tpu_custom_call.1} parent=0
    #allocation3 [shape = 'u8[8192]{0}', space=vmem, size = 0x2000, scoped, tag = 'input window, operand 0, single buffered']
    #allocation4 [shape = 's32[1]{0}', space=sflag, size = 0x4, scoped, tag = 'scoped memory for tpu_custom_call.1']
    %12 = vsyncpa [#allocation4], 0
    // Predicated region
    $region2: #{tpu_custom_call.1} parent=1 // pred_check
      _
    $region3: #{tpu_custom_call.1} parent=1 // pred_check_branch
      %14 = sbr.rel (0) target = $region5
    $region4: #{tpu_custom_call.1} parent=1 // pred_region
      %s16 = ssub.s32 256, 256
      %17 = vsyncadd [#allocation4], %s16
      %s18 = sshll.u32 [#allocation3], 4
      %s19 = int_to_ptr.vmem [resolvable:$true] %s18
      %24 = dma.hbm_to_vmem [thread:$0]  %s0, 256, %s19, [#allocation4], 128, 128, 8
    $region5: #{tpu_custom_call.1} parent=1 // pred_fallthru
      _
    // Predicated region
    $region6: #{tpu_custom_call.1} parent=1 // pred_check
      _
    $region7: #{tpu_custom_call.1} parent=1 // pred_check_branch
      %26 = sbr.rel (0) target = $region9
    $region8: #{tpu_custom_call.1} parent=1 // pred_region
      _
    $region9: #{tpu_custom_call.1} parent=1 // pred_fallthru
      _
    // Predicated region
    $region10: #{tpu_custom_call.1} parent=1 // pred_check
      _
    $region11: #{tpu_custom_call.1} parent=1 // pred_check_branch
      %28 = sbr.rel (0) target = $region13
    $region12: #{tpu_custom_call.1} parent=1 // pred_region
      _
    $region13: #{tpu_custom_call.1} parent=1 // pred_fallthru
      _
    // Predicated region
    $region14: #{tpu_custom_call.1} parent=1 // pred_check
      _
    $region15: #{tpu_custom_call.1} parent=1 // pred_check_branch
      %30 = sbr.rel (0) target = $region17
    $region16: #{tpu_custom_call.1} parent=1 // pred_region
      _
    $region17: #{tpu_custom_call.1} parent=1 // pred_fallthru
      _
    // Predicated region
    $region18: #{tpu_custom_call.1} parent=1 // pred_check
      _
    $region19: #{tpu_custom_call.1} parent=1 // pred_check_branch
      %32 = sbr.rel (0) target = $region21
    $region20: #{tpu_custom_call.1} parent=1 // pred_region
      _
    $region21: #{tpu_custom_call.1} parent=1 // pred_fallthru
      _
    // Predicated region
    $region22: #{tpu_custom_call.1} parent=1 // pred_check
      _
    $region23: #{tpu_custom_call.1} parent=1 // pred_check_branch
      %34 = sbr.rel (0) target = $region25
    $region24: #{tpu_custom_call.1} parent=1 // pred_region
      %35 = dma.done [#allocation4], 256
    $region25: #{tpu_custom_call.1} parent=1 // pred_fallthru
      _
    %v36 = vld [vmem:[#allocation3] sm:$0xff]
    %v37 = vld [vmem:[#allocation3 + $0x8] sm:$0xff]
    %v38 = vld [vmem:[%s1] sm:$0xff]
    %v39 = vld [vmem:[%s1 + $0x8] sm:$0xff]
    %v40 = vld [vmem:[%s1 + $0x10] sm:$0xff]
    %v41 = vld [vmem:[%s1 + $0x18] sm:$0xff]
    %v42 = vld [vmem:[%s1 + $0x20] sm:$0xff]
    %v43 = vld [vmem:[%s1 + $0x28] sm:$0xff]
    %v44 = vld [vmem:[%s1 + $0x30] sm:$0xff]
    %v45 = vld [vmem:[%s1 + $0x38] sm:$0xff]
    %v46 = vld [vmem:[%s1 + $0x40] sm:$0xff]
    %v47 = vld [vmem:[%s1 + $0x48] sm:$0xff]
    %v48 = vld [vmem:[%s1 + $0x50] sm:$0xff]
    %v49 = vld [vmem:[%s1 + $0x58] sm:$0xff]
    %v50 = vld [vmem:[%s1 + $0x60] sm:$0xff]
    %v51 = vld [vmem:[%s1 + $0x68] sm:$0xff]
    %v52 = vld [vmem:[%s1 + $0x70] sm:$0xff]
    %v53 = vld [vmem:[%s1 + $0x78] sm:$0xff]
    %v54 = vld [vmem:[%s2] sm:$0x1]
    %v56 = vlaneseq
    %v57 = vshrl.u32 %v56, 7
    %v58 = vsub.s32 0, %v57
    %v59 = vrot.slane %v54, %v58
    %61 = vmatprep.subr.mxu0 0.0
    %62 = vmatpush1.msra.mxu0 %v38
    %63 = vmatprep.subr.mxu0 0.0
    %64 = vmatpush1.msra.mxu0 %v39
    %65 = vmatprep.subr.mxu0 0.0
    %66 = vmatpush1.msra.mxu0 %v40
    %67 = vmatprep.subr.mxu0 0.0
    %68 = vmatpush1.msra.mxu0 %v41
    %69 = vmatprep.subr.mxu0 0.0
    %70 = vmatpush1.msra.mxu0 %v42
    %71 = vmatprep.subr.mxu0 0.0
    %72 = vmatpush1.msra.mxu0 %v43
    %73 = vmatprep.subr.mxu0 0.0
    %74 = vmatpush1.msra.mxu0 %v44
    %75 = vmatprep.subr.mxu0 0.0
    %76 = vmatpush1.msra.mxu0 %v45
    %77 = vmatprep.subr.mxu0 0.0
    %78 = vmatpush1.msra.mxu0 %v46
    %79 = vmatprep.subr.mxu0 0.0
    %80 = vmatpush1.msra.mxu0 %v47
    %81 = vmatprep.subr.mxu0 0.0
    %82 = vmatpush1.msra.mxu0 %v48
    %83 = vmatprep.subr.mxu0 0.0
    %84 = vmatpush1.msra.mxu0 %v49
    %85 = vmatprep.subr.mxu0 0.0
    %86 = vmatpush1.msra.mxu0 %v50
    %87 = vmatprep.subr.mxu0 0.0
    %88 = vmatpush1.msra.mxu0 %v51
    %89 = vmatprep.subr.mxu0 0.0
    %90 = vmatpush1.msra.mxu0 %v52
    %91 = vmatprep.subr.mxu0 0.0
    %92 = vmatpush1.msra.mxu0 %v53
    %93 = vmatprep.subr.mxu0 0.0
    %94 = vmatpush1.msra.mxu0 0.0
    %95 = vmatprep.subr.mxu0 0.0
    %96 = vmatpush1.msra.mxu0 0.0
    %97 = vmatprep.subr.mxu0 0.0
    %98 = vmatpush1.msra.mxu0 0.0
    %99 = vmatprep.subr.mxu0 0.0
    %100 = vmatpush1.msra.mxu0 0.0
    %101 = vmatprep.subr.mxu0 0.0
    %102 = vmatpush1.msra.mxu0 0.0
    %103 = vmatprep.subr.mxu0 0.0
    %104 = vmatpush1.msra.mxu0 0.0
    %105 = vmatprep.subr.mxu0 0.0
    %106 = vmatpush1.msra.mxu0 0.0
    %107 = vmatprep.subr.mxu0 0.0
    %108 = vmatpush1.msra.mxu0 0.0
    %109 = vmatprep.subr.mxu0 0.0
    %110 = vmatpush1.msra.mxu0 0.0
    %111 = vmatprep.subr.mxu0 0.0
    %112 = vmatpush1.msra.mxu0 0.0
    %113 = vmatprep.subr.mxu0 0.0
    %114 = vmatpush1.msra.mxu0 0.0
    %115 = vmatprep.subr.mxu0 0.0
    %116 = vmatpush1.msra.mxu0 0.0
    %117 = vmatprep.subr.mxu0 0.0
    %118 = vmatpush1.msra.mxu0 0.0
    %119 = vmatprep.subr.mxu0 0.0
    %120 = vmatpush1.msra.mxu0 0.0
    %121 = vmatprep.subr.mxu0 0.0
    %122 = vmatpush1.msra.mxu0 0.0
    %123 = vmatprep.subr.mxu0 0.0
    %124 = vmatpush1.msra.mxu0 0.0
    %125 = vmatprep.mubr.f32.mxu0 0.0
    %126 = vmatmul.mubr.f32.gmra.mrb[0].mxu0 %v36
    %v127 = vpop.f32.mrb[0].mxu0
    %v128 = vadd.f32 %v59, %v127
    %v129 = vpop.f32.mrb[0].mxu0
    %130 = vmatprep.mubr.f32.mxu0 0.0
    %131 = vmatmul.mubr.f32.gmra.mrb[0].mxu0 %v37
    %v132 = vpop.f32.mrb[0].mxu0
    %v133 = vadd.f32 %v59, %v132
    %v134 = vpop.f32.mrb[0].mxu0
    %135 = vdwg.mxu0
    %v136 = vmax.f32 %v128, 0.0
    %v137 = vmax.f32 %v133, 0.0
    %v138 = vrot.slane %v136, 4
    %v139 = vadd.f32 %v136, %v138
    %v140 = vrot.slane %v139, 2
    %v141 = vadd.f32 %v139, %v140
    %v142 = vrot.slane %v141, 1
    %v143 = vadd.f32 %v141, %v142
    %v144 = vrot.slane %v137, 4
    %v145 = vadd.f32 %v137, %v144
    %v146 = vrot.slane %v145, 2
    %v147 = vadd.f32 %v145, %v146
    %v148 = vrot.slane %v147, 1
    %v149 = vadd.f32 %v147, %v148
    %v150 = vld [vmem:[%s3] sm:$0xff]
    %v151 = vld [vmem:[%s3 + $0x8] sm:$0xff]
    %v152 = vld [vmem:[%s3 + $0x10] sm:$0xff]
    %v153 = vld [vmem:[%s3 + $0x18] sm:$0xff]
    %v154 = vld [vmem:[%s3 + $0x20] sm:$0xff]
    %v155 = vld [vmem:[%s3 + $0x28] sm:$0xff]
    %v156 = vld [vmem:[%s3 + $0x30] sm:$0xff]
    %v157 = vld [vmem:[%s3 + $0x38] sm:$0xff]
    %v158 = vld [vmem:[%s3 + $0x40] sm:$0xff]
    %v159 = vld [vmem:[%s3 + $0x48] sm:$0xff]
    %v160 = vld [vmem:[%s3 + $0x50] sm:$0xff]
    %v161 = vld [vmem:[%s3 + $0x58] sm:$0xff]
    %v162 = vld [vmem:[%s3 + $0x60] sm:$0xff]
    %v163 = vld [vmem:[%s3 + $0x68] sm:$0xff]
    %v164 = vld [vmem:[%s3 + $0x70] sm:$0xff]
    %v165 = vld [vmem:[%s3 + $0x78] sm:$0xff]
    %v166 = vld [vmem:[#allocation2] sm:$0x1]
    %v167 = vmul.f32 %v166, 8.0
    %v169 = vlaneseq
    %v170 = vshrl.u32 %v169, 7
    %v171 = vsub.s32 0, %v170
    %v172 = vrot.slane %v167, %v171
    %vm176 = vcmask 1041409
    %v177 = vsel %vm176, %v149, %v143
    %179 = vmatprep.subr.mxu0 0.0
    %180 = vmatpush1.msra.mxu0 %v150
    %181 = vmatprep.subr.mxu0 0.0
    %182 = vmatpush1.msra.mxu0 %v151
    %183 = vmatprep.subr.mxu0 0.0
    %184 = vmatpush1.msra.mxu0 %v152
    %185 = vmatprep.subr.mxu0 0.0
    %186 = vmatpush1.msra.mxu0 %v153
    %187 = vmatprep.subr.mxu0 0.0
    %188 = vmatpush1.msra.mxu0 %v154
    %189 = vmatprep.subr.mxu0 0.0
    %190 = vmatpush1.msra.mxu0 %v155
    %191 = vmatprep.subr.mxu0 0.0
    %192 = vmatpush1.msra.mxu0 %v156
    %193 = vmatprep.subr.mxu0 0.0
    %194 = vmatpush1.msra.mxu0 %v157
    %195 = vmatprep.subr.mxu0 0.0
    %196 = vmatpush1.msra.mxu0 %v158
    %197 = vmatprep.subr.mxu0 0.0
    %198 = vmatpush1.msra.mxu0 %v159
    %199 = vmatprep.subr.mxu0 0.0
    %200 = vmatpush1.msra.mxu0 %v160
    %201 = vmatprep.subr.mxu0 0.0
    %202 = vmatpush1.msra.mxu0 %v161
    %203 = vmatprep.subr.mxu0 0.0
    %204 = vmatpush1.msra.mxu0 %v162
    %205 = vmatprep.subr.mxu0 0.0
    %206 = vmatpush1.msra.mxu0 %v163
    %207 = vmatprep.subr.mxu0 0.0
    %208 = vmatpush1.msra.mxu0 %v164
    %209 = vmatprep.subr.mxu0 0.0
    %210 = vmatpush1.msra.mxu0 %v165
    %211 = vmatprep.subr.mxu0 0.0
    %212 = vmatpush1.msra.mxu0 0.0
    %213 = vmatprep.subr.mxu0 0.0
    %214 = vmatpush1.msra.mxu0 0.0
    %215 = vmatprep.subr.mxu0 0.0
    %216 = vmatpush1.msra.mxu0 0.0
    %217 = vmatprep.subr.mxu0 0.0
    %218 = vmatpush1.msra.mxu0 0.0
    %219 = vmatprep.subr.mxu0 0.0
    %220 = vmatpush1.msra.mxu0 0.0
    %221 = vmatprep.subr.mxu0 0.0
    %222 = vmatpush1.msra.mxu0 0.0
    %223 = vmatprep.subr.mxu0 0.0
    %224 = vmatpush1.msra.mxu0 0.0
    %225 = vmatprep.subr.mxu0 0.0
    %226 = vmatpush1.msra.mxu0 0.0
    %227 = vmatprep.subr.mxu0 0.0
    %228 = vmatpush1.msra.mxu0 0.0
    %229 = vmatprep.subr.mxu0 0.0
    %230 = vmatpush1.msra.mxu0 0.0
    %231 = vmatprep.subr.mxu0 0.0
    %232 = vmatpush1.msra.mxu0 0.0
    %233 = vmatprep.subr.mxu0 0.0
    %234 = vmatpush1.msra.mxu0 0.0
    %235 = vmatprep.subr.mxu0 0.0
    %236 = vmatpush1.msra.mxu0 0.0
    %237 = vmatprep.subr.mxu0 0.0
    %238 = vmatpush1.msra.mxu0 0.0
    %239 = vmatprep.subr.mxu0 0.0
    %240 = vmatpush1.msra.mxu0 0.0
    %241 = vmatprep.subr.mxu0 0.0
    %242 = vmatpush1.msra.mxu0 0.0
    %243 = vmatprep.mubr.f32.mxu0 0.0
    %244 = vmatmul.mubr.f32.gmra.mrb[0].mxu0 %v177
    %v245 = vpop.f32.mrb[0].mxu0
    %v246 = vadd.f32 %v172, %v245
    %v247 = vpop.f32.mrb[0].mxu0
    %248 = vdwg.mxu0
    %vm249 = vcmask 1024
    %250 = vst.msk [vmem:[%s5] sm:$0x3] %vm249, %v246
    // Predicated region
    $region26: #{tpu_custom_call.1} parent=1 // pred_check
      _
    $region27: #{tpu_custom_call.1} parent=1 // pred_check_branch
      %252 = sbr.rel (0) target = $region29
    $region28: #{tpu_custom_call.1} parent=1 // pred_region
      _
    $region29: #{tpu_custom_call.1} parent=1 // pred_fallthru
      _
    // Predicated region
    $region30: #{tpu_custom_call.1} parent=1 // pred_check
      _
    $region31: #{tpu_custom_call.1} parent=1 // pred_check_branch
      %254 = sbr.rel (0) target = $region33
    $region32: #{tpu_custom_call.1} parent=1 // pred_region
      _
    $region33: #{tpu_custom_call.1} parent=1 // pred_fallthru
      _
    %255 = vsyncpa [#allocation4], 1

</llo_original>
